<compile_context>
chip_gen: v7x
topology: tpu7x:2x2x1
jax: 0.10.0
libtpu: 0.0.40
codegen_flags: <defaults>
</compile_context>

<pallas_src>
import jax
import jax.numpy as jnp
from jax import lax
from jax.experimental import pallas as pl
from jax.experimental.pallas import tpu as pltpu


def _mf_kernel(u_idx_ref, i_idx_ref,      # scalar-prefetch (SMEM): (B_pad,) int32 each
               emb_u_hbm, emb_i_hbm,      # HBM-resident tables (pl.ANY)
               o_ref,                     # (1, b_tile) f32 lane-dense scores
               u_buf, i_buf, sem):        # VMEM scratch (b_tile, L) x2 + DMA sems (2,)
    b_tile, n_latent = u_buf.shape
    base = pl.program_id(0) * b_tile

    def gather_start(idx_ref, tbl_hbm, buf, s):
        @pl.loop(0, b_tile)
        def _(r):
            row = idx_ref[base + r]
            pltpu.make_async_copy(tbl_hbm.at[pl.ds(row, 1)],
                                  buf.at[pl.ds(r, 1)], s).start()

    def gather_wait(tbl_hbm, buf, s):
        @pl.loop(0, b_tile)
        def _(r):
            # Descriptor reconstructed with a dummy (same-shape) source; each
            # wait consumes one row-copy's completion on this semaphore.
            pltpu.make_async_copy(tbl_hbm.at[pl.ds(0, 1)],
                                  buf.at[pl.ds(r, 1)], s).wait()

    # Issue every row gather for both tables first, then drain: the small row
    # DMAs are all in flight concurrently.
    gather_start(u_idx_ref, emb_u_hbm, u_buf, sem.at[0])
    gather_start(i_idx_ref, emb_i_hbm, i_buf, sem.at[1])
    gather_wait(emb_u_hbm, u_buf, sem.at[0])
    gather_wait(emb_i_hbm, i_buf, sem.at[1])

    # Elementwise product on the VPU, latent reduction on the MXU via a ones
    # vector so the result lands directly lane-dense as (1, b_tile).
    prod = u_buf[...] * i_buf[...]                       # (b_tile, L) f32
    ones = jnp.ones((8, n_latent), dtype=jnp.float32)    # MXU-friendly M=8
    scores = lax.dot_general(
        ones, prod,
        dimension_numbers=(((1,), (1,)), ((), ())),      # contract over latent
        preferred_element_type=jnp.float32)              # (8, b_tile), rows equal
    o_ref[...] = scores[0:1, :]                          # (1, b_tile)


def mf_forward(u, i, emb_u, emb_i, *, b_tile=128):
    """u, i: (B,) int indices. emb_u: (n_users, L), emb_i: (n_items, L)."""
    B = u.shape[0]
    L = emb_u.shape[1]
    assert emb_i.shape[1] == L

    n_tiles = pl.cdiv(B, b_tile)
    B_pad = n_tiles * b_tile

    # Pad indices with 0 (a valid row); padded lanes are discarded below.
    u_p = jnp.pad(u.astype(jnp.int32), (0, B_pad - B))
    i_p = jnp.pad(i.astype(jnp.int32), (0, B_pad - B))

    grid_spec = pltpu.PrefetchScalarGridSpec(
        num_scalar_prefetch=2,
        grid=(n_tiles,),
        in_specs=[
            pl.BlockSpec(memory_space=pl.ANY),   # emb_u stays in HBM
            pl.BlockSpec(memory_space=pl.ANY),   # emb_i stays in HBM
        ],
        out_specs=pl.BlockSpec((1, b_tile), lambda t, u_sm, i_sm: (0, t)),
        scratch_shapes=[
            pltpu.VMEM((b_tile, L), jnp.float32),
            pltpu.VMEM((b_tile, L), jnp.float32),
            pltpu.SemaphoreType.DMA((2,)),
        ],
    )

    out = pl.pallas_call(
        _mf_kernel,
        out_shape=jax.ShapeDtypeStruct((1, B_pad), jnp.float32),
        grid_spec=grid_spec,
        compiler_params=pltpu.CompilerParams(
            dimension_semantics=("parallel",),        # v7x: shard batch tiles over 2 TCs
            vmem_limit_bytes=32 * 1024 * 1024,        # tiny footprint; fits all gens
        ),
    )(u_p, i_p, emb_u.astype(jnp.float32), emb_i.astype(jnp.float32))

    return out[0, :B]   # (B,) like PyTorch's (e_u * e_i).sum(1)


def orthogonal_init(key, rows, cols):
    """Deterministic stand-in for nn.init.orthogonal_ (QR of a Gaussian)."""
    a = jax.random.normal(key, (max(rows, cols), min(rows, cols)), dtype=jnp.float32)
    q, _ = jnp.linalg.qr(a)
    q = q[:rows, :cols] if rows >= cols else q[:cols, :rows].T
    return q.astype(jnp.float32)


def reference_forward(u, i, emb_u, emb_i):
    return jnp.sum(emb_u[u] * emb_i[i], axis=1)


if __name__ == "__main__":
    key = jax.random.PRNGKey(0)
    k_u, k_i, k_uidx, k_iidx = jax.random.split(key, 4)

    n_users, n_items, n_latent = 16, 24, 32
    batch = 8

    emb_u = orthogonal_init(k_u, n_users, n_latent)   # nn.Embedding(n_users, n_latent).weight
    emb_i = orthogonal_init(k_i, n_items, n_latent)   # nn.Embedding(n_items, n_latent).weight

    u = jax.random.randint(k_uidx, (batch,), 0, n_users, dtype=jnp.int32)
    i = jax.random.randint(k_iidx, (batch,), 0, n_items, dtype=jnp.int32)

    out = mf_forward(u, i, emb_u, emb_i)
    out = jax.block_until_ready(out)

    ref = reference_forward(u, i, emb_u, emb_i)
    assert out.shape == (batch,)
    assert jnp.allclose(out, ref, atol=1e-5, rtol=1e-5), (out, ref)

    print("KERNEL_OK")
</pallas_src>

<mosaic_0001>
module attributes {stable_mosaic.version = 11 : i64} {
  func.func @_mf_kernel(%arg0: i32, %arg1: memref<128xi32, #tpu.memory_space<smem>>, %arg2: memref<128xi32, #tpu.memory_space<smem>>, %arg3: memref<16x32xf32, #tpu.memory_space<any>>, %arg4: memref<24x32xf32, #tpu.memory_space<any>>, %arg5: memref<1x128xf32, #tpu.memory_space<vmem>>, %arg6: memref<128x32xf32, #tpu.memory_space<vmem>>, %arg7: memref<128x32xf32, #tpu.memory_space<vmem>>, %arg8: memref<2x!tpu.dma_semaphore, #tpu.memory_space<semaphore_mem>>) attributes {dimension_semantics = [#tpu.dimension_semantics<parallel>], iteration_bounds = array<i64: 1>, scalar_prefetch = 2 : i64, scratch_operands = 3 : i64, tpu.core_type = #tpu.core_type<tc>, window_params = [{}, {}, {transform_indices = @transform_2, window_bounds = array<i64: 1, 128>}]} {
    %c128_i32 = arith.constant 128 : i32
    %0 = arith.muli %arg0, %c128_i32 : i32
    %c0_i32 = arith.constant 0 : i32
    %c0_i32_0 = arith.constant 0 : i32
    %c128_i32_1 = arith.constant 128 : i32
    %1 = arith.addi %c0_i32_0, %c128_i32_1 : i32
    %c1_i32 = arith.constant 1 : i32
    scf.for %arg9 = %c0_i32_0 to %1 step %c1_i32  : i32 {
      %c1_i32_24 = arith.constant 1 : i32
      %12 = arith.muli %arg9, %c1_i32_24 : i32
      %c0_i32_25 = arith.constant 0 : i32
      %13 = arith.addi %c0_i32_25, %12 : i32
      %14 = arith.addi %0, %13 : i32
      %15 = arith.index_cast %14 : i32 to index
      %16 = memref.load %arg1[%15] : memref<128xi32, #tpu.memory_space<smem>>
      %c0_i32_26 = arith.constant 0 : i32
      %17 = tpu.memref_slice %arg3[%16, %c0_i32_26] : memref<16x32xf32, #tpu.memory_space<any>> -> memref<1x32xf32, #tpu.memory_space<any>>
      %c0_i32_27 = arith.constant 0 : i32
      %18 = tpu.memref_slice %arg6[%13, %c0_i32_27] : memref<128x32xf32, #tpu.memory_space<vmem>> -> memref<1x32xf32, #tpu.memory_space<vmem>>
      %19 = tpu.memref_slice %arg8[%c0_i32] : memref<2x!tpu.dma_semaphore, #tpu.memory_space<semaphore_mem>> -> memref<1x!tpu.dma_semaphore, #tpu.memory_space<semaphore_mem>>
      %20 = tpu.memref_squeeze %19 : memref<1x!tpu.dma_semaphore, #tpu.memory_space<semaphore_mem>> -> memref<!tpu.dma_semaphore, #tpu.memory_space<semaphore_mem>>
      tpu.enqueue_dma source(%17 : memref<1x32xf32, #tpu.memory_space<any>>) target(%18 : memref<1x32xf32, #tpu.memory_space<vmem>>) target_semaphore(%20 : memref<!tpu.dma_semaphore, #tpu.memory_space<semaphore_mem>>)
    }
    %c128_i32_2 = arith.constant 128 : i32
    %c1_i32_3 = arith.constant 1 : i32
    %c0_i32_4 = arith.constant 0 : i32
    %c128_i32_5 = arith.constant 128 : i32
    %2 = arith.addi %c0_i32_4, %c128_i32_5 : i32
    %c1_i32_6 = arith.constant 1 : i32
    scf.for %arg9 = %c0_i32_4 to %2 step %c1_i32_6  : i32 {
      %c1_i32_24 = arith.constant 1 : i32
      %12 = arith.muli %arg9, %c1_i32_24 : i32
      %c0_i32_25 = arith.constant 0 : i32
      %13 = arith.addi %c0_i32_25, %12 : i32
      %14 = arith.addi %0, %13 : i32
      %15 = arith.index_cast %14 : i32 to index
      %16 = memref.load %arg2[%15] : memref<128xi32, #tpu.memory_space<smem>>
      %c0_i32_26 = arith.constant 0 : i32
      %17 = tpu.memref_slice %arg4[%16, %c0_i32_26] : memref<24x32xf32, #tpu.memory_space<any>> -> memref<1x32xf32, #tpu.memory_space<any>>
      %c0_i32_27 = arith.constant 0 : i32
      %18 = tpu.memref_slice %arg7[%13, %c0_i32_27] : memref<128x32xf32, #tpu.memory_space<vmem>> -> memref<1x32xf32, #tpu.memory_space<vmem>>
      %19 = tpu.memref_slice %arg8[%c1_i32_3] : memref<2x!tpu.dma_semaphore, #tpu.memory_space<semaphore_mem>> -> memref<1x!tpu.dma_semaphore, #tpu.memory_space<semaphore_mem>>
      %20 = tpu.memref_squeeze %19 : memref<1x!tpu.dma_semaphore, #tpu.memory_space<semaphore_mem>> -> memref<!tpu.dma_semaphore, #tpu.memory_space<semaphore_mem>>
      tpu.enqueue_dma source(%17 : memref<1x32xf32, #tpu.memory_space<any>>) target(%18 : memref<1x32xf32, #tpu.memory_space<vmem>>) target_semaphore(%20 : memref<!tpu.dma_semaphore, #tpu.memory_space<semaphore_mem>>)
    }
    %c128_i32_7 = arith.constant 128 : i32
    %c0_i32_8 = arith.constant 0 : i32
    %c0_i32_9 = arith.constant 0 : i32
    %c128_i32_10 = arith.constant 128 : i32
    %3 = arith.addi %c0_i32_9, %c128_i32_10 : i32
    %c1_i32_11 = arith.constant 1 : i32
    scf.for %arg9 = %c0_i32_9 to %3 step %c1_i32_11  : i32 {
      %c1_i32_24 = arith.constant 1 : i32
      %12 = arith.muli %arg9, %c1_i32_24 : i32
      %c0_i32_25 = arith.constant 0 : i32
      %13 = arith.addi %c0_i32_25, %12 : i32
      %c0_i32_26 = arith.constant 0 : i32
      %c0_i32_27 = arith.constant 0 : i32
      %14 = tpu.memref_slice %arg3[%c0_i32_26, %c0_i32_27] : memref<16x32xf32, #tpu.memory_space<any>> -> memref<1x32xf32, #tpu.memory_space<any>>
      %c0_i32_28 = arith.constant 0 : i32
      %15 = tpu.memref_slice %arg6[%13, %c0_i32_28] : memref<128x32xf32, #tpu.memory_space<vmem>> -> memref<1x32xf32, #tpu.memory_space<vmem>>
      %16 = tpu.memref_slice %arg8[%c0_i32_8] : memref<2x!tpu.dma_semaphore, #tpu.memory_space<semaphore_mem>> -> memref<1x!tpu.dma_semaphore, #tpu.memory_space<semaphore_mem>>
      %17 = tpu.memref_squeeze %16 : memref<1x!tpu.dma_semaphore, #tpu.memory_space<semaphore_mem>> -> memref<!tpu.dma_semaphore, #tpu.memory_space<semaphore_mem>>
      tpu.wait_dma2 semaphore(%17 : memref<!tpu.dma_semaphore, #tpu.memory_space<semaphore_mem>>) src(%14 : memref<1x32xf32, #tpu.memory_space<any>>) dst(%15 : memref<1x32xf32, #tpu.memory_space<vmem>>)
    }
    %c128_i32_12 = arith.constant 128 : i32
    %c1_i32_13 = arith.constant 1 : i32
    %c0_i32_14 = arith.constant 0 : i32
    %c128_i32_15 = arith.constant 128 : i32
    %4 = arith.addi %c0_i32_14, %c128_i32_15 : i32
    %c1_i32_16 = arith.constant 1 : i32
    scf.for %arg9 = %c0_i32_14 to %4 step %c1_i32_16  : i32 {
      %c1_i32_24 = arith.constant 1 : i32
      %12 = arith.muli %arg9, %c1_i32_24 : i32
      %c0_i32_25 = arith.constant 0 : i32
      %13 = arith.addi %c0_i32_25, %12 : i32
      %c0_i32_26 = arith.constant 0 : i32
      %c0_i32_27 = arith.constant 0 : i32
      %14 = tpu.memref_slice %arg4[%c0_i32_26, %c0_i32_27] : memref<24x32xf32, #tpu.memory_space<any>> -> memref<1x32xf32, #tpu.memory_space<any>>
      %c0_i32_28 = arith.constant 0 : i32
      %15 = tpu.memref_slice %arg7[%13, %c0_i32_28] : memref<128x32xf32, #tpu.memory_space<vmem>> -> memref<1x32xf32, #tpu.memory_space<vmem>>
      %16 = tpu.memref_slice %arg8[%c1_i32_13] : memref<2x!tpu.dma_semaphore, #tpu.memory_space<semaphore_mem>> -> memref<1x!tpu.dma_semaphore, #tpu.memory_space<semaphore_mem>>
      %17 = tpu.memref_squeeze %16 : memref<1x!tpu.dma_semaphore, #tpu.memory_space<semaphore_mem>> -> memref<!tpu.dma_semaphore, #tpu.memory_space<semaphore_mem>>
      tpu.wait_dma2 semaphore(%17 : memref<!tpu.dma_semaphore, #tpu.memory_space<semaphore_mem>>) src(%14 : memref<1x32xf32, #tpu.memory_space<any>>) dst(%15 : memref<1x32xf32, #tpu.memory_space<vmem>>)
    }
    %c128_i32_17 = arith.constant 128 : i32
    %c0 = arith.constant 0 : index
    %c0_18 = arith.constant 0 : index
    %5 = vector.load %arg6[%c0, %c0_18] : memref<128x32xf32, #tpu.memory_space<vmem>>, vector<128x32xf32>
    %c0_19 = arith.constant 0 : index
    %c0_20 = arith.constant 0 : index
    %6 = vector.load %arg7[%c0_19, %c0_20] : memref<128x32xf32, #tpu.memory_space<vmem>>, vector<128x32xf32>
    %7 = arith.mulf %5, %6 : vector<128x32xf32>
    %cst = arith.constant 1.000000e+00 : f32
    %8 = vector.broadcast %cst : f32 to vector<8x32xf32>
    %cst_21 = arith.constant dense<0.000000e+00> : vector<8x128xf32>
    %9 = tpu.matmul %8, %7, %cst_21 {dimension_numbers = #tpu.dot_dimension_numbers<[1], [1], [0], [0], [0, 0, 1, 0], [], []>} : vector<8x32xf32>, vector<128x32xf32>, vector<8x128xf32> -> vector<8x128xf32>
    %10 = vector.extract_strided_slice %9 {offsets = [0, 0], sizes = [1, 128], strides = [1, 1]} : vector<8x128xf32> to vector<1x128xf32>
    %c0_22 = arith.constant 0 : index
    %c0_23 = arith.constant 0 : index
    %11 = vector.load %arg5[%c0_22, %c0_23] : memref<1x128xf32, #tpu.memory_space<vmem>>, vector<1x128xf32>
    tpu.vector_store %arg5[%c0_22, %c0_23], %10 {strides = array<i32>} : memref<1x128xf32, #tpu.memory_space<vmem>>, vector<1x128xf32>,
    return
  }
  func.func @transform_2(%arg0: i32, %arg1: memref<128xi32, #tpu.memory_space<smem>>, %arg2: memref<128xi32, #tpu.memory_space<smem>>) -> (i32, i32) {
    %c0_i32 = arith.constant 0 : i32
    %c0_i32_0 = arith.constant 0 : i32
    return %c0_i32, %arg0 : i32, i32
  }
}

</mosaic_0001>

<llo_original>
// kernel: tpu_custom_call.1
$region0: #{tpu_custom_call.1}
  #allocation0 [shape = 'u32[]', space=smem, size = 0x4, offset = 0x4, fixed_abs, tag = 'smem constant byte address 0x4 - core index']
  #allocation1 [shape = 'u32[144,128]{1,0:T(1,128)}', space=vmem, size = 0x12000, scoped, tag = 'internal scratch']
  #allocation2 [shape = 'f32[128,32]{1,0:T(8,128)}', space=vmem, size = 0x10000, scoped, tag = 'scratch operand']
  #allocation3 [shape = 'f32[128,32]{1,0:T(8,128)}', space=vmem, size = 0x10000, scoped, tag = 'scratch operand']
  #allocation4 [shape = 's32[2]{0}', space=sflag, size = 0x8, scoped, tag = 'scratch operand']
  #allocation5 [shape = 's32[1]{0}', space=sflag, size = 0x4, scoped, tag = 'scoped memory for tpu_custom_call.1']
  #allocation6 [shape = 'u8[512]{0}', space=smem, size = 0x200, scoped, tag = 'prefetched SMEM operand 0']
  #allocation7 [shape = 'u8[512]{0}', space=smem, size = 0x200, scoped, tag = 'prefetched SMEM operand 1']
  #allocation10 [shape = 's32[]', space=sflag, size = 0x4, offset = 0, fixed_abs, tag = 'sflag constant byte address 0x0 - dummy sync flag']
  #allocation11 [shape = 's32[]', space=sflag, size = 0x4, offset = 0, fixed_abs, tag = 'sflag constant byte address 0x0 - dummy sync flag']
  #allocation12 [shape = 'u32[]', space=smem, size = 0x4, offset = 0x44, fixed_abs, tag = 'smem constant byte address 0x44 - assertion arg 0']
  #allocation13 [shape = 'u32[]', space=smem, size = 0x4, offset = 0x48, fixed_abs, tag = 'smem constant byte address 0x48 - assertion arg 1']
  #allocation14 [shape = 's32[]', space=sflag, size = 0x4, offset = 0, fixed_abs, tag = 'sflag constant byte address 0x0 - dummy sync flag']
  #allocation15 [shape = 's32[]', space=sflag, size = 0x4, offset = 0, fixed_abs, tag = 'sflag constant byte address 0x0 - dummy sync flag']
  %s0 = inlined_call_operand.hbm [shape: s32[128], index: 0, kind: input, shape index: {}]
  %s1 = inlined_call_operand.vmem [shape: s32[128], index: 1, kind: input, shape index: {}]
  %s2 = inlined_call_operand.hbm [shape: f32[16,32], index: 2, kind: input, shape index: {}]
  %s3 = inlined_call_operand.hbm [shape: f32[24,32], index: 3, kind: input, shape index: {}]
  %s4 = inlined_call_operand.hbm [shape: f32[1,128], index: 4, kind: output, shape index: {}]
  %s5 = sld [smem:[#allocation0]]
  $region46: #{tpu_custom_call.1} parent=0
    _
  %s7 = ssub.s32 1, %s5
  %s8 = scalar_select 0, %s7, %s5
  %10 = dma.hbm_to_smem %s0, 16, [#allocation6], [#allocation5]
  %s11 = sshll.u32 %s1, 4
  %s12 = int_to_ptr.vmem [resolvable:$true] %s11
  %14 = dma.vmem_to_smem %s12, 16, [#allocation7], [#allocation5]
  %15 = dma.done [#allocation5], 32
  %16 = sfence
  $region1: #{tpu_custom_call.1} parent=0
    #allocation8 [shape = 'u8[512]{0}', space=vmem, size = 0x400, scoped, tag = 'output window, operand 0, single buffered']
    #allocation9 [shape = 's32[1]{0}', space=sflag, size = 0x4, scoped, tag = 'scoped memory for tpu_custom_call.1']
    %17 = vsyncpa [#allocation9], 0
    %s18 = smul.u32 0, 128
    loop: start=0, step=1, limit=128
    $region2: #{tpu_custom_call.1} parent=1 // loop_pre_header
      _
    $region3: #{tpu_custom_call.1} parent=1 // loop_header
      %s20 = sphi 0, %s24
      %p21 = scmp.ge.s32.totalorder %s20, 128
    $region4: #{tpu_custom_call.1} parent=1 // loop_header_branch
      %23 = sbr.rel (%p21) target = $region8
    $region5: #{tpu_custom_call.1} parent=1 // loop_body
      %s25 = sadd.s32 %s18, %s20
      %s26 = sld [smem:[#allocation6 + %s25]]
      %s27 = smul.addr %s26, 16
      %s28 = scalar_lea.hbm %s2, %s27
      %s29 = scalar_lea.vmem [#allocation2], %s20
      // Predicated region
      $region9: #{tpu_custom_call.1} parent=5 // pred_check
        _
      $region10: #{tpu_custom_call.1} parent=5 // pred_check_branch
        %31 = sbr.rel target = $region12
      $region11: #{tpu_custom_call.1} parent=5 // pred_region
        %32 = sst [smem:[#allocation12]] [#allocation11]
        %33 = sst [smem:[#allocation13]] [#allocation10]
      $region12: #{tpu_custom_call.1} parent=5 // pred_fallthru
        _
      %35 = shalt.err (0)
      %s37 = sshll.u32 %s29, 4
      %s38 = int_to_ptr.vmem [resolvable:$true] %s37
      %40 = dma.hbm_to_vmem [thread:$0]  %s28, 16, %s38, [#allocation4]
    $region6: #{tpu_custom_call.1} parent=1 // loop_footer
      %s24 = sadd.s32 1, %s20
    $region7: #{tpu_custom_call.1} parent=1 // loop_footer_branch
      %19 = sbr.rel target = $region3
    $region8: #{tpu_custom_call.1} parent=1 // loop_exit
      _
    loop: start=0, step=1, limit=128
    $region13: #{tpu_custom_call.1} parent=1 // loop_pre_header
      _
    $region14: #{tpu_custom_call.1} parent=1 // loop_header
      %s42 = sphi 0, %s46
      %p43 = scmp.ge.s32.totalorder %s42, 128
    $region15: #{tpu_custom_call.1} parent=1 // loop_header_branch
      %45 = sbr.rel (%p43) target = $region19
    $region16: #{tpu_custom_call.1} parent=1 // loop_body
      %s47 = sadd.s32 %s18, %s42
      %s48 = sld [smem:[#allocation7 + %s47]]
      %s49 = smul.addr %s48, 16
      %s50 = scalar_lea.hbm %s3, %s49
      %s51 = scalar_lea.vmem [#allocation3], %s42
      %s52 = scalar_lea.sflag [#allocation4], 1
      // Predicated region
      $region20: #{tpu_custom_call.1} parent=16 // pred_check
        _
      $region21: #{tpu_custom_call.1} parent=16 // pred_check_branch
        %54 = sbr.rel target = $region23
      $region22: #{tpu_custom_call.1} parent=16 // pred_region
        %55 = sst [smem:[#allocation12]] [#allocation15]
        %56 = sst [smem:[#allocation13]] [#allocation14]
      $region23: #{tpu_custom_call.1} parent=16 // pred_fallthru
        _
      %58 = shalt.err (0)
      %s60 = sshll.u32 %s51, 4
      %s61 = int_to_ptr.vmem [resolvable:$true] %s60
      %63 = dma.hbm_to_vmem [thread:$0]  %s50, 16, %s61, %s52
    $region17: #{tpu_custom_call.1} parent=1 // loop_footer
      %s46 = sadd.s32 1, %s42
    $region18: #{tpu_custom_call.1} parent=1 // loop_footer_branch
      %41 = sbr.rel target = $region14
    $region19: #{tpu_custom_call.1} parent=1 // loop_exit
      _
    loop: start=0, step=1, limit=128
    $region24: #{tpu_custom_call.1} parent=1 // loop_pre_header
      _
    $region25: #{tpu_custom_call.1} parent=1 // loop_header
      %s65 = sphi 0, %s69
      %p66 = scmp.ge.s32.totalorder %s65, 128
    $region26: #{tpu_custom_call.1} parent=1 // loop_header_branch
      %68 = sbr.rel (%p66) target = $region30
    $region27: #{tpu_custom_call.1} parent=1 // loop_body
      %s70 = smul.u32 1, 1
      %s71 = sshll.u32 %s70, 4
      %72 = dma.done [#allocation4], %s71
    $region28: #{tpu_custom_call.1} parent=1 // loop_footer
      %s69 = sadd.s32 1, %s65
    $region29: #{tpu_custom_call.1} parent=1 // loop_footer_branch
      %64 = sbr.rel target = $region25
    $region30: #{tpu_custom_call.1} parent=1 // loop_exit
      _
    loop: start=0, step=1, limit=128
    $region31: #{tpu_custom_call.1} parent=1 // loop_pre_header
      _
    $region32: #{tpu_custom_call.1} parent=1 // loop_header
      %s74 = sphi 0, %s78
      %p75 = scmp.ge.s32.totalorder %s74, 128
    $region33: #{tpu_custom_call.1} parent=1 // loop_header_branch
      %77 = sbr.rel (%p75) target = $region37
    $region34: #{tpu_custom_call.1} parent=1 // loop_body
      %s79 = scalar_lea.sflag [#allocation4], 1
      %s80 = smul.u32 1, 1
      %s81 = sshll.u32 %s80, 4
      %82 = dma.done %s79, %s81
    $region35: #{tpu_custom_call.1} parent=1 // loop_footer
      %s78 = sadd.s32 1, %s74
    $region36: #{tpu_custom_call.1} parent=1 // loop_footer_branch
      %73 = sbr.rel target = $region32
    $region37: #{tpu_custom_call.1} parent=1 // loop_exit
      _
    %v83 = vld [vmem:[#allocation2] sm:$0xff]
    %v84 = vld [vmem:[#allocation2 + $0x8] sm:$0xff]
    %v85 = vld [vmem:[#allocation2 + $0x10] sm:$0xff]
    %v86 = vld [vmem:[#allocation2 + $0x18] sm:$0xff]
    %v87 = vld [vmem:[#allocation2 + $0x20] sm:$0xff]
    %v88 = vld [vmem:[#allocation2 + $0x28] sm:$0xff]
    %v89 = vld [vmem:[#allocation2 + $0x30] sm:$0xff]
    %v90 = vld [vmem:[#allocation2 + $0x38] sm:$0xff]
    %v91 = vld [vmem:[#allocation2 + $0x40] sm:$0xff]
    %v92 = vld [vmem:[#allocation2 + $0x48] sm:$0xff]
    %v93 = vld [vmem:[#allocation2 + $0x50] sm:$0xff]
    %v94 = vld [vmem:[#allocation2 + $0x58] sm:$0xff]
    %v95 = vld [vmem:[#allocation2 + $0x60] sm:$0xff]
    %v96 = vld [vmem:[#allocation2 + $0x68] sm:$0xff]
    %v97 = vld [vmem:[#allocation2 + $0x70] sm:$0xff]
    %v98 = vld [vmem:[#allocation2 + $0x78] sm:$0xff]
    %v99 = vld [vmem:[#allocation3] sm:$0xff]
    %v100 = vld [vmem:[#allocation3 + $0x8] sm:$0xff]
    %v101 = vld [vmem:[#allocation3 + $0x10] sm:$0xff]
    %v102 = vld [vmem:[#allocation3 + $0x18] sm:$0xff]
    %v103 = vld [vmem:[#allocation3 + $0x20] sm:$0xff]
    %v104 = vld [vmem:[#allocation3 + $0x28] sm:$0xff]
    %v105 = vld [vmem:[#allocation3 + $0x30] sm:$0xff]
    %v106 = vld [vmem:[#allocation3 + $0x38] sm:$0xff]
    %v107 = vld [vmem:[#allocation3 + $0x40] sm:$0xff]
    %v108 = vld [vmem:[#allocation3 + $0x48] sm:$0xff]
    %v109 = vld [vmem:[#allocation3 + $0x50] sm:$0xff]
    %v110 = vld [vmem:[#allocation3 + $0x58] sm:$0xff]
    %v111 = vld [vmem:[#allocation3 + $0x60] sm:$0xff]
    %v112 = vld [vmem:[#allocation3 + $0x68] sm:$0xff]
    %v113 = vld [vmem:[#allocation3 + $0x70] sm:$0xff]
    %v114 = vld [vmem:[#allocation3 + $0x78] sm:$0xff]
    %v115 = vmul.f32 %v83, %v99
    %v116 = vmul.f32 %v84, %v100
    %v117 = vmul.f32 %v85, %v101
    %v118 = vmul.f32 %v86, %v102
    %v119 = vmul.f32 %v87, %v103
    %v120 = vmul.f32 %v88, %v104
    %v121 = vmul.f32 %v89, %v105
    %v122 = vmul.f32 %v90, %v106
    %v123 = vmul.f32 %v91, %v107
    %v124 = vmul.f32 %v92, %v108
    %v125 = vmul.f32 %v93, %v109
    %v126 = vmul.f32 %v94, %v110
    %v127 = vmul.f32 %v95, %v111
    %v128 = vmul.f32 %v96, %v112
    %v129 = vmul.f32 %v97, %v113
    %v130 = vmul.f32 %v98, %v114
    %vm131 = vcmask 261120
    %v133 = vsel %vm131, 1.0, 0
    %v136 = vsel %vm131, %v115, 0
    %v139 = vsel %vm131, %v116, 0
    %v142 = vsel %vm131, %v117, 0
    %v145 = vsel %vm131, %v118, 0
    %v148 = vsel %vm131, %v119, 0
    %v151 = vsel %vm131, %v120, 0
    %v154 = vsel %vm131, %v121, 0
    %v157 = vsel %vm131, %v122, 0
    %v160 = vsel %vm131, %v123, 0
    %v163 = vsel %vm131, %v124, 0
    %v166 = vsel %vm131, %v125, 0
    %v169 = vsel %vm131, %v126, 0
    %v172 = vsel %vm131, %v127, 0
    %v175 = vsel %vm131, %v128, 0
    %v178 = vsel %vm131, %v129, 0
    %v181 = vsel %vm131, %v130, 0
    %183 = vmatprep.subr.mxu0 0.0
    %184 = vmatpush1.xpose.msra.mxu0 %v136
    %185 = vmatprep.subr.mxu0 0.0
    %186 = vmatpush1.xpose.msra.mxu0 %v139
    %187 = vmatprep.subr.mxu0 0.0
    %188 = vmatpush1.xpose.msra.mxu0 %v142
    %189 = vmatprep.subr.mxu0 0.0
    %190 = vmatpush1.xpose.msra.mxu0 %v145
    %191 = vmatprep.subr.mxu0 0.0
    %192 = vmatpush1.xpose.msra.mxu0 %v148
    %193 = vmatprep.subr.mxu0 0.0
    %194 = vmatpush1.xpose.msra.mxu0 %v151
    %195 = vmatprep.subr.mxu0 0.0
    %196 = vmatpush1.xpose.msra.mxu0 %v154
    %197 = vmatprep.subr.mxu0 0.0
    %198 = vmatpush1.xpose.msra.mxu0 %v157
    %199 = vmatprep.subr.mxu0 0.0
    %200 = vmatpush1.xpose.msra.mxu0 %v160
    %201 = vmatprep.subr.mxu0 0.0
    %202 = vmatpush1.xpose.msra.mxu0 %v163
    %203 = vmatprep.subr.mxu0 0.0
    %204 = vmatpush1.xpose.msra.mxu0 %v166
    %205 = vmatprep.subr.mxu0 0.0
    %206 = vmatpush1.xpose.msra.mxu0 %v169
    %207 = vmatprep.subr.mxu0 0.0
    %208 = vmatpush1.xpose.msra.mxu0 %v172
    %209 = vmatprep.subr.mxu0 0.0
    %210 = vmatpush1.xpose.msra.mxu0 %v175
    %211 = vmatprep.subr.mxu0 0.0
    %212 = vmatpush1.xpose.msra.mxu0 %v178
    %213 = vmatprep.subr.mxu0 0.0
    %214 = vmatpush1.xpose.msra.mxu0 %v181
    %215 = vmatprep.subr.mxu0 0.0
    %216 = vmatpush1.xpose.msra.mxu0 0.0
    %217 = vmatprep.subr.mxu0 0.0
    %218 = vmatpush1.xpose.msra.mxu0 0.0
    %219 = vmatprep.subr.mxu0 0.0
    %220 = vmatpush1.xpose.msra.mxu0 0.0
    %221 = vmatprep.subr.mxu0 0.0
    %222 = vmatpush1.xpose.msra.mxu0 0.0
    %223 = vmatprep.subr.mxu0 0.0
    %224 = vmatpush1.xpose.msra.mxu0 0.0
    %225 = vmatprep.subr.mxu0 0.0
    %226 = vmatpush1.xpose.msra.mxu0 0.0
    %227 = vmatprep.subr.mxu0 0.0
    %228 = vmatpush1.xpose.msra.mxu0 0.0
    %229 = vmatprep.subr.mxu0 0.0
    %230 = vmatpush1.xpose.msra.mxu0 0.0
    %231 = vmatprep.subr.mxu0 0.0
    %232 = vmatpush1.xpose.msra.mxu0 0.0
    %233 = vmatprep.subr.mxu0 0.0
    %234 = vmatpush1.xpose.msra.mxu0 0.0
    %235 = vmatprep.subr.mxu0 0.0
    %236 = vmatpush1.xpose.msra.mxu0 0.0
    %237 = vmatprep.subr.mxu0 0.0
    %238 = vmatpush1.xpose.msra.mxu0 0.0
    %239 = vmatprep.subr.mxu0 0.0
    %240 = vmatpush1.xpose.msra.mxu0 0.0
    %241 = vmatprep.subr.mxu0 0.0
    %242 = vmatpush1.xpose.msra.mxu0 0.0
    %243 = vmatprep.subr.mxu0 0.0
    %244 = vmatpush1.xpose.msra.mxu0 0.0
    %245 = vmatprep.subr.mxu0 0.0
    %246 = vmatpush1.xpose.msra.mxu0 0.0
    %247 = vmatprep.mubr.f32.mxu0 0.0
    %248 = vmatmul.mubr.f32.gmra.mrb[0].mxu0 %v133
    %v249 = vpop.f32.mrb[0].mxu0
    %v250 = vadd.f32 0.0, %v249
    %v251 = vpop.f32.mrb[0].mxu0
    %252 = vdwg.mxu0
    %253 = vst [vmem:[#allocation8] sm:$0x1] %v250
    // Predicated region
    $region38: #{tpu_custom_call.1} parent=1 // pred_check
      _
    $region39: #{tpu_custom_call.1} parent=1 // pred_check_branch
      %255 = sbr.rel (0) target = $region41
    $region40: #{tpu_custom_call.1} parent=1 // pred_region
      %s257 = ssub.s32 16, 16
      %258 = vsyncadd [#allocation9], %s257
      %s260 = sshll.u32 [#allocation8], 4
      %s261 = int_to_ptr.vmem [resolvable:$true] %s260
      %263 = dma.vmem_to_hbm [thread:$0]  %s261, 16, %s4, [#allocation9]
    $region41: #{tpu_custom_call.1} parent=1 // pred_fallthru
      _
    // Predicated region
    $region42: #{tpu_custom_call.1} parent=1 // pred_check
      _
    $region43: #{tpu_custom_call.1} parent=1 // pred_check_branch
      %265 = sbr.rel (0) target = $region45
    $region44: #{tpu_custom_call.1} parent=1 // pred_region
      %266 = dma.done [#allocation9], 16
    $region45: #{tpu_custom_call.1} parent=1 // pred_fallthru
      _
    %267 = vsyncpa [#allocation9], 1
  %268 = vsyncmov [#allocation4]
  %s269 = vpop.sfrf %268
  %p270 = scmp.eq.s32.totalorder %s269, 0
  %p271 = pneg %p270
  %273 = shalt.err (%p271)
  %s274 = scalar_lea.sflag [#allocation4], 1
  %275 = vsyncmov %s274
  %s276 = vpop.sfrf %275
  %p277 = scmp.eq.s32.totalorder %s276, 0
  %p278 = pneg %p277
  %280 = shalt.err (%p278)

</llo_original>
